<compile_context>
chip_gen: v7x
topology: tpu7x:2x2x1
jax: 0.10.0
libtpu: 0.0.40
codegen_flags: <defaults>
</compile_context>

<pallas_src>
import jax
import jax.numpy as jnp
from jax.experimental import pallas as pl
from jax.experimental.pallas import tpu as pltpu


def _round_up(v: int, m: int) -> int:
    return -(-v // m) * m


def _lift_kernel(x_ref, o_ref):
    # x_ref: (TN, C) ; o_ref: (TN, A*C).
    # A static sub-stores of the same input vregs: pure vld/vst body, HBM-bound.
    x = x_ref[...]
    c = x_ref.shape[-1]
    a = o_ref.shape[-1] // c
    for k in range(a):
        o_ref[:, k * c:(k + 1) * c] = x


def _num_tensorcores() -> int:
    """Best-effort TensorCores-per-chip detection (v7x = 2, v5e/v6e = 1)."""
    try:
        info = pltpu.get_tpu_info()
        for attr in ("num_cores", "num_tensorcores", "tensorcore_count", "core_count"):
            v = getattr(info, attr, None)
            if isinstance(v, int) and v > 0:
                return v
    except Exception:
        pass
    try:
        kind = jax.devices()[0].device_kind.lower()
        if "v7" in kind:
            return 2
    except Exception:
        pass
    return 1


def lift_block_epn(
    x: jax.Array,
    kanchor: int,
    *,
    vmem_budget_bytes: int = 24 * 1024 * 1024,
    force_kernel: bool = False,
    small_fast_path_bytes: int = 1 * 1024 * 1024,
) -> jax.Array:
    """Pallas implementation of LiftBlockEPN.forward:  (N, C) -> (N, kanchor, C)."""
    N, C = x.shape
    A = int(kanchor)
    itemsize = jnp.dtype(x.dtype).itemsize
    out_bytes = N * A * C * itemsize

    # Tiny-input fast path: kernel dispatch + pipeline prologue dominate; XLA's
    # broadcast is effectively free (and fuses into the consumer).
    if not force_kernel and out_bytes <= small_fast_path_bytes:
        return jnp.broadcast_to(x[:, None, :], (N, A, C))

    # Sublane packing granularity per dtype width.
    sub = {4: 8, 2: 16, 1: 32}.get(itemsize, 8)

    # Double-buffered per-row VMEM footprint WITH lane padding (last dim of each VMEM
    # buffer is padded to a multiple of 128 lanes).
    in_row = _round_up(C, 128) * itemsize
    out_row = _round_up(A * C, 128) * itemsize
    row_bytes = 2 * (in_row + out_row)

    # Couple the compiler VMEM limit to the budget; cap at 48 MiB (safe on v7x's
    # 64 MiB per-TC VMEM, trivially fine on v5e/v6e).
    vmem_limit = min(vmem_budget_bytes + 8 * 1024 * 1024, 48 * 1024 * 1024)
    eff_budget = vmem_limit - 8 * 1024 * 1024

    tile_n = max(sub, (eff_budget // row_bytes) // sub * sub)
    num_tc = _num_tensorcores()

    if tile_n >= N:
        # Whole problem fits in one tile. Only split it on multi-TC parts (v7x);
        # on v5e/v6e the grid is a serial loop and splitting is pure overhead.
        tile_n = N
        if num_tc >= 2 and N >= 2 * sub:
            tile_n = _round_up(pl.cdiv(N, 2), sub)
    elif num_tc >= 2:
        # Keep the grid even so the 2 TensorCores stay balanced.
        grid_n = pl.cdiv(N, tile_n)
        if grid_n % 2 == 1:
            t2 = _round_up(pl.cdiv(N, grid_n + 1), sub)
            if sub <= t2 < tile_n:
                tile_n = t2

    grid_n = pl.cdiv(N, tile_n)

    out2d = pl.pallas_call(
        _lift_kernel,
        out_shape=jax.ShapeDtypeStruct((N, A * C), x.dtype),
        grid_spec=pltpu.PrefetchScalarGridSpec(
            num_scalar_prefetch=0,
            grid=(grid_n,),
            in_specs=[pl.BlockSpec((tile_n, C), lambda i: (i, 0))],
            out_specs=pl.BlockSpec((tile_n, A * C), lambda i: (i, 0)),
        ),
        compiler_params=pltpu.CompilerParams(
            dimension_semantics=("parallel",),
            vmem_limit_bytes=vmem_limit,
        ),
        cost_estimate=pl.CostEstimate(
            flops=0,
            transcendentals=0,
            bytes_accessed=(1 + A) * N * C * itemsize,
        ),
    )(x)

    # Row-major contiguous: (N, A*C) -> (N, A, C) reshape is free.
    return out2d.reshape(N, A, C)


if __name__ == "__main__":
    # Module config (deterministic, in-script). LiftBlockEPN has no learnable
    # parameters; block_name / in_dim are unused by the forward pass.
    kanchor = 4          # config.kanchor
    in_dim = 32          # nc
    num_points = 300     # np — deliberately NOT a multiple of the tile to exercise ragged N

    key = jax.random.PRNGKey(0)
    x = jax.random.normal(key, (num_points, in_dim), dtype=jnp.float32)

    # Reference: pure-JAX equivalent of unsqueeze(1).expand(-1, kanchor, -1)
    ref = jnp.broadcast_to(x[:, None, :], (num_points, kanchor, in_dim))

    # Exercise the Pallas kernel (the default path would take the tiny-input fast path).
    out = lift_block_epn(x, kanchor, force_kernel=True)
    out = jax.block_until_ready(out)
    assert out.shape == (num_points, kanchor, in_dim)
    assert jnp.array_equal(out, ref)

    # Default path (tiny input -> broadcast_to fast path) must agree as well.
    out_fast = jax.block_until_ready(lift_block_epn(x, kanchor))
    assert jnp.array_equal(out_fast, ref)

    print("KERNEL_OK")
</pallas_src>

<mosaic_0001>
module attributes {stable_mosaic.version = 11 : i64} {
  func.func @_lift_kernel(%arg0: i32, %arg1: memref<300x32xf32, #tpu.memory_space<vmem>>, %arg2: memref<300x128xf32, #tpu.memory_space<vmem>>) attributes {dimension_semantics = [#tpu.dimension_semantics<parallel>], iteration_bounds = array<i64: 1>, scalar_prefetch = 0 : i64, scratch_operands = 0 : i64, tpu.core_type = #tpu.core_type<tc>, window_params = [{transform_indices = @transform_0, window_bounds = array<i64: 300, 32>}, {transform_indices = @transform_1, window_bounds = array<i64: 300, 128>}]} {
    %c0 = arith.constant 0 : index
    %c0_0 = arith.constant 0 : index
    %0 = vector.load %arg1[%c0, %c0_0] : memref<300x32xf32, #tpu.memory_space<vmem>>, vector<300x32xf32>
    %c0_1 = arith.constant 0 : index
    %c0_2 = arith.constant 0 : index
    %1 = vector.load %arg2[%c0_1, %c0_2] : memref<300x128xf32, #tpu.memory_space<vmem>>, vector<300x32xf32>
    tpu.vector_store %arg2[%c0_1, %c0_2], %0 {strides = array<i32>} : memref<300x128xf32, #tpu.memory_space<vmem>>, vector<300x32xf32>,
    %c0_3 = arith.constant 0 : index
    %c32 = arith.constant 32 : index
    %2 = vector.load %arg2[%c0_3, %c32] : memref<300x128xf32, #tpu.memory_space<vmem>>, vector<300x32xf32>
    tpu.vector_store %arg2[%c0_3, %c32], %0 {strides = array<i32>} : memref<300x128xf32, #tpu.memory_space<vmem>>, vector<300x32xf32>,
    %c0_4 = arith.constant 0 : index
    %c64 = arith.constant 64 : index
    %3 = vector.load %arg2[%c0_4, %c64] : memref<300x128xf32, #tpu.memory_space<vmem>>, vector<300x32xf32>
    tpu.vector_store %arg2[%c0_4, %c64], %0 {strides = array<i32>} : memref<300x128xf32, #tpu.memory_space<vmem>>, vector<300x32xf32>,
    %c0_5 = arith.constant 0 : index
    %c96 = arith.constant 96 : index
    %4 = vector.load %arg2[%c0_5, %c96] : memref<300x128xf32, #tpu.memory_space<vmem>>, vector<300x32xf32>
    tpu.vector_store %arg2[%c0_5, %c96], %0 {strides = array<i32>} : memref<300x128xf32, #tpu.memory_space<vmem>>, vector<300x32xf32>,
    return
  }
  func.func @transform_0(%arg0: i32) -> (i32, i32) {
    %c0_i32 = arith.constant 0 : i32
    %c0_i32_0 = arith.constant 0 : i32
    return %arg0, %c0_i32 : i32, i32
  }
  func.func @transform_1(%arg0: i32) -> (i32, i32) {
    %c0_i32 = arith.constant 0 : i32
    %c0_i32_0 = arith.constant 0 : i32
    return %arg0, %c0_i32 : i32, i32
  }
}

</mosaic_0001>

<llo_original>
// kernel: tpu_custom_call.1
$region0: #{tpu_custom_call.1}
  #allocation0 [shape = 'u32[]', space=smem, size = 0x4, offset = 0x4, fixed_abs, tag = 'smem constant byte address 0x4 - core index']
  #allocation1 [shape = 'u32[144,128]{1,0:T(1,128)}', space=vmem, size = 0x12000, scoped, tag = 'internal scratch']
  %s0 = inlined_call_operand.vmem [shape: f32[300,32], index: 0, kind: input, shape index: {}]
  %s1 = inlined_call_operand.hbm [shape: f32[300,128], index: 1, kind: output, shape index: {}]
  %s2 = sld [smem:[#allocation0]]
  $region14: #{tpu_custom_call.1} parent=0
    _
  %s4 = ssub.s32 1, %s2
  %s5 = scalar_select 0, %s4, %s2
  $region1: #{tpu_custom_call.1} parent=0
    #allocation2 [shape = 'u8[155648]{0}', space=vmem, size = 0x26000, scoped, tag = 'output window, operand 0, single buffered']
    #allocation3 [shape = 's32[1]{0}', space=sflag, size = 0x4, scoped, tag = 'scoped memory for tpu_custom_call.1']
    %6 = vsyncpa [#allocation3], 0
    // Predicated region
    $region2: #{tpu_custom_call.1} parent=1 // pred_check
      _
    $region3: #{tpu_custom_call.1} parent=1 // pred_check_branch
      %8 = sbr.rel (0) target = $region5
    $region4: #{tpu_custom_call.1} parent=1 // pred_region
      _
    $region5: #{tpu_custom_call.1} parent=1 // pred_fallthru
      _
    %v9 = vld [vmem:[%s0] sm:$0xff]
    %v10 = vld [vmem:[%s0 + $0x8] sm:$0xff]
    %v11 = vld [vmem:[%s0 + $0x10] sm:$0xff]
    %v12 = vld [vmem:[%s0 + $0x18] sm:$0xff]
    %v13 = vld [vmem:[%s0 + $0x20] sm:$0xff]
    %v14 = vld [vmem:[%s0 + $0x28] sm:$0xff]
    %v15 = vld [vmem:[%s0 + $0x30] sm:$0xff]
    %v16 = vld [vmem:[%s0 + $0x38] sm:$0xff]
    %v17 = vld [vmem:[%s0 + $0x40] sm:$0xff]
    %v18 = vld [vmem:[%s0 + $0x48] sm:$0xff]
    %v19 = vld [vmem:[%s0 + $0x50] sm:$0xff]
    %v20 = vld [vmem:[%s0 + $0x58] sm:$0xff]
    %v21 = vld [vmem:[%s0 + $0x60] sm:$0xff]
    %v22 = vld [vmem:[%s0 + $0x68] sm:$0xff]
    %v23 = vld [vmem:[%s0 + $0x70] sm:$0xff]
    %v24 = vld [vmem:[%s0 + $0x78] sm:$0xff]
    %v25 = vld [vmem:[%s0 + $0x80] sm:$0xff]
    %v26 = vld [vmem:[%s0 + $0x88] sm:$0xff]
    %v27 = vld [vmem:[%s0 + $0x90] sm:$0xff]
    %v28 = vld [vmem:[%s0 + $0x98] sm:$0xff]
    %v29 = vld [vmem:[%s0 + $0xa0] sm:$0xff]
    %v30 = vld [vmem:[%s0 + $0xa8] sm:$0xff]
    %v31 = vld [vmem:[%s0 + $0xb0] sm:$0xff]
    %v32 = vld [vmem:[%s0 + $0xb8] sm:$0xff]
    %v33 = vld [vmem:[%s0 + $0xc0] sm:$0xff]
    %v34 = vld [vmem:[%s0 + $0xc8] sm:$0xff]
    %v35 = vld [vmem:[%s0 + $0xd0] sm:$0xff]
    %v36 = vld [vmem:[%s0 + $0xd8] sm:$0xff]
    %v37 = vld [vmem:[%s0 + $0xe0] sm:$0xff]
    %v38 = vld [vmem:[%s0 + $0xe8] sm:$0xff]
    %v39 = vld [vmem:[%s0 + $0xf0] sm:$0xff]
    %v40 = vld [vmem:[%s0 + $0xf8] sm:$0xff]
    %v41 = vld [vmem:[%s0 + $0x100] sm:$0xff]
    %v42 = vld [vmem:[%s0 + $0x108] sm:$0xff]
    %v43 = vld [vmem:[%s0 + $0x110] sm:$0xff]
    %v44 = vld [vmem:[%s0 + $0x118] sm:$0xff]
    %v45 = vld [vmem:[%s0 + $0x120] sm:$0xff]
    %v46 = vld [vmem:[%s0 + $0x128] sm:$0xf]
    %vm47 = vcmask 261120
    %48 = vst.msk [vmem:[#allocation2] sm:$0xff] %vm47, %v9
    %49 = vst.msk [vmem:[#allocation2 + $0x8] sm:$0xff] %vm47, %v10
    %50 = vst.msk [vmem:[#allocation2 + $0x10] sm:$0xff] %vm47, %v11
    %51 = vst.msk [vmem:[#allocation2 + $0x18] sm:$0xff] %vm47, %v12
    %52 = vst.msk [vmem:[#allocation2 + $0x20] sm:$0xff] %vm47, %v13
    %53 = vst.msk [vmem:[#allocation2 + $0x28] sm:$0xff] %vm47, %v14
    %54 = vst.msk [vmem:[#allocation2 + $0x30] sm:$0xff] %vm47, %v15
    %55 = vst.msk [vmem:[#allocation2 + $0x38] sm:$0xff] %vm47, %v16
    %56 = vst.msk [vmem:[#allocation2 + $0x40] sm:$0xff] %vm47, %v17
    %57 = vst.msk [vmem:[#allocation2 + $0x48] sm:$0xff] %vm47, %v18
    %58 = vst.msk [vmem:[#allocation2 + $0x50] sm:$0xff] %vm47, %v19
    %59 = vst.msk [vmem:[#allocation2 + $0x58] sm:$0xff] %vm47, %v20
    %60 = vst.msk [vmem:[#allocation2 + $0x60] sm:$0xff] %vm47, %v21
    %61 = vst.msk [vmem:[#allocation2 + $0x68] sm:$0xff] %vm47, %v22
    %62 = vst.msk [vmem:[#allocation2 + $0x70] sm:$0xff] %vm47, %v23
    %63 = vst.msk [vmem:[#allocation2 + $0x78] sm:$0xff] %vm47, %v24
    %64 = vst.msk [vmem:[#allocation2 + $0x80] sm:$0xff] %vm47, %v25
    %65 = vst.msk [vmem:[#allocation2 + $0x88] sm:$0xff] %vm47, %v26
    %66 = vst.msk [vmem:[#allocation2 + $0x90] sm:$0xff] %vm47, %v27
    %67 = vst.msk [vmem:[#allocation2 + $0x98] sm:$0xff] %vm47, %v28
    %68 = vst.msk [vmem:[#allocation2 + $0xa0] sm:$0xff] %vm47, %v29
    %69 = vst.msk [vmem:[#allocation2 + $0xa8] sm:$0xff] %vm47, %v30
    %70 = vst.msk [vmem:[#allocation2 + $0xb0] sm:$0xff] %vm47, %v31
    %71 = vst.msk [vmem:[#allocation2 + $0xb8] sm:$0xff] %vm47, %v32
    %72 = vst.msk [vmem:[#allocation2 + $0xc0] sm:$0xff] %vm47, %v33
    %73 = vst.msk [vmem:[#allocation2 + $0xc8] sm:$0xff] %vm47, %v34
    %74 = vst.msk [vmem:[#allocation2 + $0xd0] sm:$0xff] %vm47, %v35
    %75 = vst.msk [vmem:[#allocation2 + $0xd8] sm:$0xff] %vm47, %v36
    %76 = vst.msk [vmem:[#allocation2 + $0xe0] sm:$0xff] %vm47, %v37
    %77 = vst.msk [vmem:[#allocation2 + $0xe8] sm:$0xff] %vm47, %v38
    %78 = vst.msk [vmem:[#allocation2 + $0xf0] sm:$0xff] %vm47, %v39
    %79 = vst.msk [vmem:[#allocation2 + $0xf8] sm:$0xff] %vm47, %v40
    %80 = vst.msk [vmem:[#allocation2 + $0x100] sm:$0xff] %vm47, %v41
    %81 = vst.msk [vmem:[#allocation2 + $0x108] sm:$0xff] %vm47, %v42
    %82 = vst.msk [vmem:[#allocation2 + $0x110] sm:$0xff] %vm47, %v43
    %83 = vst.msk [vmem:[#allocation2 + $0x118] sm:$0xff] %vm47, %v44
    %84 = vst.msk [vmem:[#allocation2 + $0x120] sm:$0xff] %vm47, %v45
    %vm85 = vcmask 257024
    %86 = vst.msk [vmem:[#allocation2 + $0x128] sm:$0xf] %vm85, %v46
    %125 = vrot.lane.b32.xlu0 %v9, 32
    %v126 = vpop.permute.xlu0 %125
    %127 = vrot.lane.b32.xlu0 %v10, 32
    %v128 = vpop.permute.xlu0 %127
    %129 = vrot.lane.b32.xlu0 %v11, 32
    %v130 = vpop.permute.xlu0 %129
    %131 = vrot.lane.b32.xlu0 %v12, 32
    %v132 = vpop.permute.xlu0 %131
    %133 = vrot.lane.b32.xlu0 %v13, 32
    %v134 = vpop.permute.xlu0 %133
    %135 = vrot.lane.b32.xlu0 %v14, 32
    %v136 = vpop.permute.xlu0 %135
    %137 = vrot.lane.b32.xlu0 %v15, 32
    %v138 = vpop.permute.xlu0 %137
    %139 = vrot.lane.b32.xlu0 %v16, 32
    %v140 = vpop.permute.xlu0 %139
    %141 = vrot.lane.b32.xlu0 %v17, 32
    %v142 = vpop.permute.xlu0 %141
    %143 = vrot.lane.b32.xlu0 %v18, 32
    %v144 = vpop.permute.xlu0 %143
    %145 = vrot.lane.b32.xlu0 %v19, 32
    %v146 = vpop.permute.xlu0 %145
    %147 = vrot.lane.b32.xlu0 %v20, 32
    %v148 = vpop.permute.xlu0 %147
    %149 = vrot.lane.b32.xlu0 %v21, 32
    %v150 = vpop.permute.xlu0 %149
    %151 = vrot.lane.b32.xlu0 %v22, 32
    %v152 = vpop.permute.xlu0 %151
    %153 = vrot.lane.b32.xlu0 %v23, 32
    %v154 = vpop.permute.xlu0 %153
    %155 = vrot.lane.b32.xlu0 %v24, 32
    %v156 = vpop.permute.xlu0 %155
    %157 = vrot.lane.b32.xlu0 %v25, 32
    %v158 = vpop.permute.xlu0 %157
    %159 = vrot.lane.b32.xlu0 %v26, 32
    %v160 = vpop.permute.xlu0 %159
    %161 = vrot.lane.b32.xlu0 %v27, 32
    %v162 = vpop.permute.xlu0 %161
    %163 = vrot.lane.b32.xlu0 %v28, 32
    %v164 = vpop.permute.xlu0 %163
    %165 = vrot.lane.b32.xlu0 %v29, 32
    %v166 = vpop.permute.xlu0 %165
    %167 = vrot.lane.b32.xlu0 %v30, 32
    %v168 = vpop.permute.xlu0 %167
    %169 = vrot.lane.b32.xlu0 %v31, 32
    %v170 = vpop.permute.xlu0 %169
    %171 = vrot.lane.b32.xlu0 %v32, 32
    %v172 = vpop.permute.xlu0 %171
    %173 = vrot.lane.b32.xlu0 %v33, 32
    %v174 = vpop.permute.xlu0 %173
    %175 = vrot.lane.b32.xlu0 %v34, 32
    %v176 = vpop.permute.xlu0 %175
    %177 = vrot.lane.b32.xlu0 %v35, 32
    %v178 = vpop.permute.xlu0 %177
    %179 = vrot.lane.b32.xlu0 %v36, 32
    %v180 = vpop.permute.xlu0 %179
    %181 = vrot.lane.b32.xlu0 %v37, 32
    %v182 = vpop.permute.xlu0 %181
    %183 = vrot.lane.b32.xlu0 %v38, 32
    %v184 = vpop.permute.xlu0 %183
    %185 = vrot.lane.b32.xlu0 %v39, 32
    %v186 = vpop.permute.xlu0 %185
    %187 = vrot.lane.b32.xlu0 %v40, 32
    %v188 = vpop.permute.xlu0 %187
    %189 = vrot.lane.b32.xlu0 %v41, 32
    %v190 = vpop.permute.xlu0 %189
    %191 = vrot.lane.b32.xlu0 %v42, 32
    %v192 = vpop.permute.xlu0 %191
    %193 = vrot.lane.b32.xlu0 %v43, 32
    %v194 = vpop.permute.xlu0 %193
    %195 = vrot.lane.b32.xlu0 %v44, 32
    %v196 = vpop.permute.xlu0 %195
    %197 = vrot.lane.b32.xlu0 %v45, 32
    %v198 = vpop.permute.xlu0 %197
    %199 = vrot.lane.b32.xlu0 %v46, 32
    %v200 = vpop.permute.xlu0 %199
    %vm239 = vcmask 523520
    %240 = vst.msk [vmem:[#allocation2] sm:$0xff] %vm239, %v126
    %241 = vst.msk [vmem:[#allocation2 + $0x8] sm:$0xff] %vm239, %v128
    %242 = vst.msk [vmem:[#allocation2 + $0x10] sm:$0xff] %vm239, %v130
    %243 = vst.msk [vmem:[#allocation2 + $0x18] sm:$0xff] %vm239, %v132
    %244 = vst.msk [vmem:[#allocation2 + $0x20] sm:$0xff] %vm239, %v134
    %245 = vst.msk [vmem:[#allocation2 + $0x28] sm:$0xff] %vm239, %v136
    %246 = vst.msk [vmem:[#allocation2 + $0x30] sm:$0xff] %vm239, %v138
    %247 = vst.msk [vmem:[#allocation2 + $0x38] sm:$0xff] %vm239, %v140
    %248 = vst.msk [vmem:[#allocation2 + $0x40] sm:$0xff] %vm239, %v142
    %249 = vst.msk [vmem:[#allocation2 + $0x48] sm:$0xff] %vm239, %v144
    %250 = vst.msk [vmem:[#allocation2 + $0x50] sm:$0xff] %vm239, %v146
    %251 = vst.msk [vmem:[#allocation2 + $0x58] sm:$0xff] %vm239, %v148
    %252 = vst.msk [vmem:[#allocation2 + $0x60] sm:$0xff] %vm239, %v150
    %253 = vst.msk [vmem:[#allocation2 + $0x68] sm:$0xff] %vm239, %v152
    %254 = vst.msk [vmem:[#allocation2 + $0x70] sm:$0xff] %vm239, %v154
    %255 = vst.msk [vmem:[#allocation2 + $0x78] sm:$0xff] %vm239, %v156
    %256 = vst.msk [vmem:[#allocation2 + $0x80] sm:$0xff] %vm239, %v158
    %257 = vst.msk [vmem:[#allocation2 + $0x88] sm:$0xff] %vm239, %v160
    %258 = vst.msk [vmem:[#allocation2 + $0x90] sm:$0xff] %vm239, %v162
    %259 = vst.msk [vmem:[#allocation2 + $0x98] sm:$0xff] %vm239, %v164
    %260 = vst.msk [vmem:[#allocation2 + $0xa0] sm:$0xff] %vm239, %v166
    %261 = vst.msk [vmem:[#allocation2 + $0xa8] sm:$0xff] %vm239, %v168
    %262 = vst.msk [vmem:[#allocation2 + $0xb0] sm:$0xff] %vm239, %v170
    %263 = vst.msk [vmem:[#allocation2 + $0xb8] sm:$0xff] %vm239, %v172
    %264 = vst.msk [vmem:[#allocation2 + $0xc0] sm:$0xff] %vm239, %v174
    %265 = vst.msk [vmem:[#allocation2 + $0xc8] sm:$0xff] %vm239, %v176
    %266 = vst.msk [vmem:[#allocation2 + $0xd0] sm:$0xff] %vm239, %v178
    %267 = vst.msk [vmem:[#allocation2 + $0xd8] sm:$0xff] %vm239, %v180
    %268 = vst.msk [vmem:[#allocation2 + $0xe0] sm:$0xff] %vm239, %v182
    %269 = vst.msk [vmem:[#allocation2 + $0xe8] sm:$0xff] %vm239, %v184
    %270 = vst.msk [vmem:[#allocation2 + $0xf0] sm:$0xff] %vm239, %v186
    %271 = vst.msk [vmem:[#allocation2 + $0xf8] sm:$0xff] %vm239, %v188
    %272 = vst.msk [vmem:[#allocation2 + $0x100] sm:$0xff] %vm239, %v190
    %273 = vst.msk [vmem:[#allocation2 + $0x108] sm:$0xff] %vm239, %v192
    %274 = vst.msk [vmem:[#allocation2 + $0x110] sm:$0xff] %vm239, %v194
    %275 = vst.msk [vmem:[#allocation2 + $0x118] sm:$0xff] %vm239, %v196
    %276 = vst.msk [vmem:[#allocation2 + $0x120] sm:$0xff] %vm239, %v198
    %vm277 = vcmask 519424
    %278 = vst.msk [vmem:[#allocation2 + $0x128] sm:$0xf] %vm277, %v200
    %279 = vrot.lane.b32.xlu0 %v9, 64
    %v280 = vpop.permute.xlu0 %279
    %281 = vrot.lane.b32.xlu0 %v10, 64
    %v282 = vpop.permute.xlu0 %281
    %283 = vrot.lane.b32.xlu0 %v11, 64
    %v284 = vpop.permute.xlu0 %283
    %285 = vrot.lane.b32.xlu0 %v12, 64
    %v286 = vpop.permute.xlu0 %285
    %287 = vrot.lane.b32.xlu0 %v13, 64
    %v288 = vpop.permute.xlu0 %287
    %289 = vrot.lane.b32.xlu0 %v14, 64
    %v290 = vpop.permute.xlu0 %289
    %291 = vrot.lane.b32.xlu0 %v15, 64
    %v292 = vpop.permute.xlu0 %291
    %293 = vrot.lane.b32.xlu0 %v16, 64
    %v294 = vpop.permute.xlu0 %293
    %295 = vrot.lane.b32.xlu0 %v17, 64
    %v296 = vpop.permute.xlu0 %295
    %297 = vrot.lane.b32.xlu0 %v18, 64
    %v298 = vpop.permute.xlu0 %297
    %299 = vrot.lane.b32.xlu0 %v19, 64
    %v300 = vpop.permute.xlu0 %299
    %301 = vrot.lane.b32.xlu0 %v20, 64
    %v302 = vpop.permute.xlu0 %301
    %303 = vrot.lane.b32.xlu0 %v21, 64
    %v304 = vpop.permute.xlu0 %303
    %305 = vrot.lane.b32.xlu0 %v22, 64
    %v306 = vpop.permute.xlu0 %305
    %307 = vrot.lane.b32.xlu0 %v23, 64
    %v308 = vpop.permute.xlu0 %307
    %309 = vrot.lane.b32.xlu0 %v24, 64
    %v310 = vpop.permute.xlu0 %309
    %311 = vrot.lane.b32.xlu0 %v25, 64
    %v312 = vpop.permute.xlu0 %311
    %313 = vrot.lane.b32.xlu0 %v26, 64
    %v314 = vpop.permute.xlu0 %313
    %315 = vrot.lane.b32.xlu0 %v27, 64
    %v316 = vpop.permute.xlu0 %315
    %317 = vrot.lane.b32.xlu0 %v28, 64
    %v318 = vpop.permute.xlu0 %317
    %319 = vrot.lane.b32.xlu0 %v29, 64
    %v320 = vpop.permute.xlu0 %319
    %321 = vrot.lane.b32.xlu0 %v30, 64
    %v322 = vpop.permute.xlu0 %321
    %323 = vrot.lane.b32.xlu0 %v31, 64
    %v324 = vpop.permute.xlu0 %323
    %325 = vrot.lane.b32.xlu0 %v32, 64
    %v326 = vpop.permute.xlu0 %325
    %327 = vrot.lane.b32.xlu0 %v33, 64
    %v328 = vpop.permute.xlu0 %327
    %329 = vrot.lane.b32.xlu0 %v34, 64
    %v330 = vpop.permute.xlu0 %329
    %331 = vrot.lane.b32.xlu0 %v35, 64
    %v332 = vpop.permute.xlu0 %331
    %333 = vrot.lane.b32.xlu0 %v36, 64
    %v334 = vpop.permute.xlu0 %333
    %335 = vrot.lane.b32.xlu0 %v37, 64
    %v336 = vpop.permute.xlu0 %335
    %337 = vrot.lane.b32.xlu0 %v38, 64
    %v338 = vpop.permute.xlu0 %337
    %339 = vrot.lane.b32.xlu0 %v39, 64
    %v340 = vpop.permute.xlu0 %339
    %341 = vrot.lane.b32.xlu0 %v40, 64
    %v342 = vpop.permute.xlu0 %341
    %343 = vrot.lane.b32.xlu0 %v41, 64
    %v344 = vpop.permute.xlu0 %343
    %345 = vrot.lane.b32.xlu0 %v42, 64
    %v346 = vpop.permute.xlu0 %345
    %347 = vrot.lane.b32.xlu0 %v43, 64
    %v348 = vpop.permute.xlu0 %347
    %349 = vrot.lane.b32.xlu0 %v44, 64
    %v350 = vpop.permute.xlu0 %349
    %351 = vrot.lane.b32.xlu0 %v45, 64
    %v352 = vpop.permute.xlu0 %351
    %353 = vrot.lane.b32.xlu0 %v46, 64
    %v354 = vpop.permute.xlu0 %353
    %vm393 = vcmask 785920
    %394 = vst.msk [vmem:[#allocation2] sm:$0xff] %vm393, %v280
    %395 = vst.msk [vmem:[#allocation2 + $0x8] sm:$0xff] %vm393, %v282
    %396 = vst.msk [vmem:[#allocation2 + $0x10] sm:$0xff] %vm393, %v284
    %397 = vst.msk [vmem:[#allocation2 + $0x18] sm:$0xff] %vm393, %v286
    %398 = vst.msk [vmem:[#allocation2 + $0x20] sm:$0xff] %vm393, %v288
    %399 = vst.msk [vmem:[#allocation2 + $0x28] sm:$0xff] %vm393, %v290
    %400 = vst.msk [vmem:[#allocation2 + $0x30] sm:$0xff] %vm393, %v292
    %401 = vst.msk [vmem:[#allocation2 + $0x38] sm:$0xff] %vm393, %v294
    %402 = vst.msk [vmem:[#allocation2 + $0x40] sm:$0xff] %vm393, %v296
    %403 = vst.msk [vmem:[#allocation2 + $0x48] sm:$0xff] %vm393, %v298
    %404 = vst.msk [vmem:[#allocation2 + $0x50] sm:$0xff] %vm393, %v300
    %405 = vst.msk [vmem:[#allocation2 + $0x58] sm:$0xff] %vm393, %v302
    %406 = vst.msk [vmem:[#allocation2 + $0x60] sm:$0xff] %vm393, %v304
    %407 = vst.msk [vmem:[#allocation2 + $0x68] sm:$0xff] %vm393, %v306
    %408 = vst.msk [vmem:[#allocation2 + $0x70] sm:$0xff] %vm393, %v308
    %409 = vst.msk [vmem:[#allocation2 + $0x78] sm:$0xff] %vm393, %v310
    %410 = vst.msk [vmem:[#allocation2 + $0x80] sm:$0xff] %vm393, %v312
    %411 = vst.msk [vmem:[#allocation2 + $0x88] sm:$0xff] %vm393, %v314
    %412 = vst.msk [vmem:[#allocation2 + $0x90] sm:$0xff] %vm393, %v316
    %413 = vst.msk [vmem:[#allocation2 + $0x98] sm:$0xff] %vm393, %v318
    %414 = vst.msk [vmem:[#allocation2 + $0xa0] sm:$0xff] %vm393, %v320
    %415 = vst.msk [vmem:[#allocation2 + $0xa8] sm:$0xff] %vm393, %v322
    %416 = vst.msk [vmem:[#allocation2 + $0xb0] sm:$0xff] %vm393, %v324
    %417 = vst.msk [vmem:[#allocation2 + $0xb8] sm:$0xff] %vm393, %v326
    %418 = vst.msk [vmem:[#allocation2 + $0xc0] sm:$0xff] %vm393, %v328
    %419 = vst.msk [vmem:[#allocation2 + $0xc8] sm:$0xff] %vm393, %v330
    %420 = vst.msk [vmem:[#allocation2 + $0xd0] sm:$0xff] %vm393, %v332
    %421 = vst.msk [vmem:[#allocation2 + $0xd8] sm:$0xff] %vm393, %v334
    %422 = vst.msk [vmem:[#allocation2 + $0xe0] sm:$0xff] %vm393, %v336
    %423 = vst.msk [vmem:[#allocation2 + $0xe8] sm:$0xff] %vm393, %v338
    %424 = vst.msk [vmem:[#allocation2 + $0xf0] sm:$0xff] %vm393, %v340
    %425 = vst.msk [vmem:[#allocation2 + $0xf8] sm:$0xff] %vm393, %v342
    %426 = vst.msk [vmem:[#allocation2 + $0x100] sm:$0xff] %vm393, %v344
    %427 = vst.msk [vmem:[#allocation2 + $0x108] sm:$0xff] %vm393, %v346
    %428 = vst.msk [vmem:[#allocation2 + $0x110] sm:$0xff] %vm393, %v348
    %429 = vst.msk [vmem:[#allocation2 + $0x118] sm:$0xff] %vm393, %v350
    %430 = vst.msk [vmem:[#allocation2 + $0x120] sm:$0xff] %vm393, %v352
    %vm431 = vcmask 781824
    %432 = vst.msk [vmem:[#allocation2 + $0x128] sm:$0xf] %vm431, %v354
    %433 = vrot.lane.b32.xlu0 %v9, 96
    %v434 = vpop.permute.xlu0 %433
    %435 = vrot.lane.b32.xlu0 %v10, 96
    %v436 = vpop.permute.xlu0 %435
    %437 = vrot.lane.b32.xlu0 %v11, 96
    %v438 = vpop.permute.xlu0 %437
    %439 = vrot.lane.b32.xlu0 %v12, 96
    %v440 = vpop.permute.xlu0 %439
    %441 = vrot.lane.b32.xlu0 %v13, 96
    %v442 = vpop.permute.xlu0 %441
    %443 = vrot.lane.b32.xlu0 %v14, 96
    %v444 = vpop.permute.xlu0 %443
    %445 = vrot.lane.b32.xlu0 %v15, 96
    %v446 = vpop.permute.xlu0 %445
    %447 = vrot.lane.b32.xlu0 %v16, 96
    %v448 = vpop.permute.xlu0 %447
    %449 = vrot.lane.b32.xlu0 %v17, 96
    %v450 = vpop.permute.xlu0 %449
    %451 = vrot.lane.b32.xlu0 %v18, 96
    %v452 = vpop.permute.xlu0 %451
    %453 = vrot.lane.b32.xlu0 %v19, 96
    %v454 = vpop.permute.xlu0 %453
    %455 = vrot.lane.b32.xlu0 %v20, 96
    %v456 = vpop.permute.xlu0 %455
    %457 = vrot.lane.b32.xlu0 %v21, 96
    %v458 = vpop.permute.xlu0 %457
    %459 = vrot.lane.b32.xlu0 %v22, 96
    %v460 = vpop.permute.xlu0 %459
    %461 = vrot.lane.b32.xlu0 %v23, 96
    %v462 = vpop.permute.xlu0 %461
    %463 = vrot.lane.b32.xlu0 %v24, 96
    %v464 = vpop.permute.xlu0 %463
    %465 = vrot.lane.b32.xlu0 %v25, 96
    %v466 = vpop.permute.xlu0 %465
    %467 = vrot.lane.b32.xlu0 %v26, 96
    %v468 = vpop.permute.xlu0 %467
    %469 = vrot.lane.b32.xlu0 %v27, 96
    %v470 = vpop.permute.xlu0 %469
    %471 = vrot.lane.b32.xlu0 %v28, 96
    %v472 = vpop.permute.xlu0 %471
    %473 = vrot.lane.b32.xlu0 %v29, 96
    %v474 = vpop.permute.xlu0 %473
    %475 = vrot.lane.b32.xlu0 %v30, 96
    %v476 = vpop.permute.xlu0 %475
    %477 = vrot.lane.b32.xlu0 %v31, 96
    %v478 = vpop.permute.xlu0 %477
    %479 = vrot.lane.b32.xlu0 %v32, 96
    %v480 = vpop.permute.xlu0 %479
    %481 = vrot.lane.b32.xlu0 %v33, 96
    %v482 = vpop.permute.xlu0 %481
    %483 = vrot.lane.b32.xlu0 %v34, 96
    %v484 = vpop.permute.xlu0 %483
    %485 = vrot.lane.b32.xlu0 %v35, 96
    %v486 = vpop.permute.xlu0 %485
    %487 = vrot.lane.b32.xlu0 %v36, 96
    %v488 = vpop.permute.xlu0 %487
    %489 = vrot.lane.b32.xlu0 %v37, 96
    %v490 = vpop.permute.xlu0 %489
    %491 = vrot.lane.b32.xlu0 %v38, 96
    %v492 = vpop.permute.xlu0 %491
    %493 = vrot.lane.b32.xlu0 %v39, 96
    %v494 = vpop.permute.xlu0 %493
    %495 = vrot.lane.b32.xlu0 %v40, 96
    %v496 = vpop.permute.xlu0 %495
    %497 = vrot.lane.b32.xlu0 %v41, 96
    %v498 = vpop.permute.xlu0 %497
    %499 = vrot.lane.b32.xlu0 %v42, 96
    %v500 = vpop.permute.xlu0 %499
    %501 = vrot.lane.b32.xlu0 %v43, 96
    %v502 = vpop.permute.xlu0 %501
    %503 = vrot.lane.b32.xlu0 %v44, 96
    %v504 = vpop.permute.xlu0 %503
    %505 = vrot.lane.b32.xlu0 %v45, 96
    %v506 = vpop.permute.xlu0 %505
    %507 = vrot.lane.b32.xlu0 %v46, 96
    %v508 = vpop.permute.xlu0 %507
    %vm547 = vcmask 1048320
    %548 = vst.msk [vmem:[#allocation2] sm:$0xff] %vm547, %v434
    %549 = vst.msk [vmem:[#allocation2 + $0x8] sm:$0xff] %vm547, %v436
    %550 = vst.msk [vmem:[#allocation2 + $0x10] sm:$0xff] %vm547, %v438
    %551 = vst.msk [vmem:[#allocation2 + $0x18] sm:$0xff] %vm547, %v440
    %552 = vst.msk [vmem:[#allocation2 + $0x20] sm:$0xff] %vm547, %v442
    %553 = vst.msk [vmem:[#allocation2 + $0x28] sm:$0xff] %vm547, %v444
    %554 = vst.msk [vmem:[#allocation2 + $0x30] sm:$0xff] %vm547, %v446
    %555 = vst.msk [vmem:[#allocation2 + $0x38] sm:$0xff] %vm547, %v448
    %556 = vst.msk [vmem:[#allocation2 + $0x40] sm:$0xff] %vm547, %v450
    %557 = vst.msk [vmem:[#allocation2 + $0x48] sm:$0xff] %vm547, %v452
    %558 = vst.msk [vmem:[#allocation2 + $0x50] sm:$0xff] %vm547, %v454
    %559 = vst.msk [vmem:[#allocation2 + $0x58] sm:$0xff] %vm547, %v456
    %560 = vst.msk [vmem:[#allocation2 + $0x60] sm:$0xff] %vm547, %v458
    %561 = vst.msk [vmem:[#allocation2 + $0x68] sm:$0xff] %vm547, %v460
    %562 = vst.msk [vmem:[#allocation2 + $0x70] sm:$0xff] %vm547, %v462
    %563 = vst.msk [vmem:[#allocation2 + $0x78] sm:$0xff] %vm547, %v464
    %564 = vst.msk [vmem:[#allocation2 + $0x80] sm:$0xff] %vm547, %v466
    %565 = vst.msk [vmem:[#allocation2 + $0x88] sm:$0xff] %vm547, %v468
    %566 = vst.msk [vmem:[#allocation2 + $0x90] sm:$0xff] %vm547, %v470
    %567 = vst.msk [vmem:[#allocation2 + $0x98] sm:$0xff] %vm547, %v472
    %568 = vst.msk [vmem:[#allocation2 + $0xa0] sm:$0xff] %vm547, %v474
    %569 = vst.msk [vmem:[#allocation2 + $0xa8] sm:$0xff] %vm547, %v476
    %570 = vst.msk [vmem:[#allocation2 + $0xb0] sm:$0xff] %vm547, %v478
    %571 = vst.msk [vmem:[#allocation2 + $0xb8] sm:$0xff] %vm547, %v480
    %572 = vst.msk [vmem:[#allocation2 + $0xc0] sm:$0xff] %vm547, %v482
    %573 = vst.msk [vmem:[#allocation2 + $0xc8] sm:$0xff] %vm547, %v484
    %574 = vst.msk [vmem:[#allocation2 + $0xd0] sm:$0xff] %vm547, %v486
    %575 = vst.msk [vmem:[#allocation2 + $0xd8] sm:$0xff] %vm547, %v488
    %576 = vst.msk [vmem:[#allocation2 + $0xe0] sm:$0xff] %vm547, %v490
    %577 = vst.msk [vmem:[#allocation2 + $0xe8] sm:$0xff] %vm547, %v492
    %578 = vst.msk [vmem:[#allocation2 + $0xf0] sm:$0xff] %vm547, %v494
    %579 = vst.msk [vmem:[#allocation2 + $0xf8] sm:$0xff] %vm547, %v496
    %580 = vst.msk [vmem:[#allocation2 + $0x100] sm:$0xff] %vm547, %v498
    %581 = vst.msk [vmem:[#allocation2 + $0x108] sm:$0xff] %vm547, %v500
    %582 = vst.msk [vmem:[#allocation2 + $0x110] sm:$0xff] %vm547, %v502
    %583 = vst.msk [vmem:[#allocation2 + $0x118] sm:$0xff] %vm547, %v504
    %584 = vst.msk [vmem:[#allocation2 + $0x120] sm:$0xff] %vm547, %v506
    %vm585 = vcmask 1044224
    %586 = vst.msk [vmem:[#allocation2 + $0x128] sm:$0xf] %vm585, %v508
    // Predicated region
    $region6: #{tpu_custom_call.1} parent=1 // pred_check
      _
    $region7: #{tpu_custom_call.1} parent=1 // pred_check_branch
      %588 = sbr.rel (0) target = $region9
    $region8: #{tpu_custom_call.1} parent=1 // pred_region
      %s590 = ssub.s32 4864, 4864
      %591 = vsyncadd [#allocation3], %s590
      %s592 = sshll.u32 [#allocation2], 4
      %s593 = int_to_ptr.vmem [resolvable:$true] %s592
      %598 = dma.vmem_to_hbm [thread:$0]  %s593, 4864, %s1, [#allocation3], 128, 128, 8
    $region9: #{tpu_custom_call.1} parent=1 // pred_fallthru
      _
    // Predicated region
    $region10: #{tpu_custom_call.1} parent=1 // pred_check
      _
    $region11: #{tpu_custom_call.1} parent=1 // pred_check_branch
      %600 = sbr.rel (0) target = $region13
    $region12: #{tpu_custom_call.1} parent=1 // pred_region
      %601 = dma.done [#allocation3], 4864
    $region13: #{tpu_custom_call.1} parent=1 // pred_fallthru
      _
    %602 = vsyncpa [#allocation3], 1

</llo_original>
